<compile_context>
chip_gen: v5e
topology: v5e:2x2
jax: 0.10.0
libtpu: 0.0.40
codegen_flags: <defaults>
</compile_context>

<pallas_src>
import collections

import jax
import jax.numpy as jnp
from jax.experimental import pallas as pl
from jax.experimental.pallas import tpu as pltpu

CONV = "conv"
UNFOLD = "unfold"
PATCH_MODES = {CONV, UNFOLD}

PatchSpec = collections.namedtuple(
    "PatchSpec", "hsize wsize hstride wstride hbase wbase")


# ---------------------------------------------------------------------------
# Helpers reproduced from the PyTorch module (static shape math -> Python).
# ---------------------------------------------------------------------------
def compute_pad(size, wnd_size, stride, base):
  assert base < wnd_size, (
      f"Patch base must be lower than its size: {wnd_size} vs {base}")
  if base > 0:
    eff_size, lpad = size - base, wnd_size - base
  else:
    eff_size, lpad = size, 0
  rem = eff_size % stride
  if rem > 0:
    nsize = max(eff_size, eff_size - rem + wnd_size)
  else:
    nsize = max(eff_size, eff_size - stride + wnd_size)
  pad = nsize - eff_size
  if pad > 0:
    if lpad > 0:
      return (lpad, pad)
    rpad = pad // 2
    return (pad - rpad, rpad)
  return (lpad, 0)


def verify_patch_specs(patch_specs):
  patch_size = None
  for ps in patch_specs:
    size = ps.hsize * ps.wsize
    if patch_size is None:
      patch_size = size
    else:
      assert patch_size == size, (
          "All patches must have the same size (HxW product): "
          f"{patch_specs[0]} vs {ps}")


def norm_shape(x):
  if x.ndim == 3:
    return x[None, ...]
  if x.ndim > 4:
    return x.reshape(-1, *x.shape[-3:])
  return x


def pad_hw(x, hpad, wpad):
  # torch F.pad(x, wpad + hpad): last dim gets wpad, second-last gets hpad.
  return jnp.pad(x, ((0, 0), (0, 0), (hpad[0], hpad[1]), (wpad[0], wpad[1])))


def extract_nonoverlap_patches(x, hs, ws):
  # x: (B, C, H, W) -> (B * nh * nw, C * hs * ws), rows ordered (b, oh, ow),
  # patch flattened in (C, hs, ws) order, matching Conv2d weight layout.
  B, C, H, W = x.shape
  nh = (H - hs) // hs + 1
  nw = (W - ws) // ws + 1
  x = x[:, :, :nh * hs, :nw * ws]
  x = x.reshape(B, C, nh, hs, nw, ws)
  x = jnp.transpose(x, (0, 2, 4, 1, 3, 5))  # (B, nh, nw, C, hs, ws)
  return x.reshape(B * nh * nw, C * hs * ws), nh, nw


def _round_up(v, m):
  return -(-v // m) * m


def _vmem_budget_and_limit():
  """Generation-aware VMEM numbers: ~cap/2 working-set budget for tile picking,
  ~3*cap/4 scoped vmem limit. 128 MiB parts (v5e/v6e) -> 64/96 MiB; v7x (64 MiB)
  -> 32/48 MiB. Falls back to conservative v7x-safe numbers if detection fails."""
  cap = 64 << 20
  try:
    info = pltpu.get_tpu_info()
    cap = int(getattr(info, "vmem_capacity_bytes", cap))
  except Exception:
    pass
  return cap // 2, (cap // 4) * 3


def _pick_tiles(m_max, k, n_out, x_isz, w_isz, out_isz, vmem_budget):
  """Pick (tm, tk): prefer the full row tile (<=512, multiple of 8); split K
  (multiples of 128 only, to keep the lane constraint) when the working set
  would not fit. The f32 accumulator and out-dtype blocks are counted."""
  tm_want = min(512, _round_up(max(m_max, 1), 8))

  def need(tm, tk):
    return (2 * tm * tk * x_isz          # x tile, double buffered
            + 2 * tk * n_out * w_isz     # weight tile, double buffered
            + 2 * n_out * 4              # bias (f32, tiny)
            + 2 * tm * n_out * out_isz   # output tile, double buffered
            + tm * n_out * 4             # f32 accumulator scratch
            + (1 << 20))                 # compiler internal-scratch headroom

  tk_cands = [k]
  t = k
  while t % 256 == 0:      # halves stay multiples of 128 (lane constraint)
    t //= 2
    tk_cands.append(t)
  # TODO(synk): huge K that is not a multiple of 128 cannot be split here and
  # falls back to a smaller tm; would need K zero-padding to split.

  best = None
  for tk in tk_cands:      # largest K tile first
    tm = tm_want
    while tm > 8 and need(tm, tk) > vmem_budget:
      tm = max(8, _round_up(tm // 2, 8))
    if best is None or tm > best[0]:
      best = (tm, tk)
    if tm == tm_want:
      return tm, tk
  return best


# ---------------------------------------------------------------------------
# Pallas kernel: per-spec patch projection over a flattened row-tile grid
# with a K reduction axis and an f32 VMEM accumulator.
# ---------------------------------------------------------------------------
def _patch_proj_kernel(w_idx_ref, row_ref, x_ref, w_ref, b_ref, o_ref, acc_ref):
  # x_ref: (tm, tk), w_ref: (1, tk, N), b_ref: (1, 1, N),
  # o_ref: (tm, N), acc_ref: (tm, N) f32 scratch.
  del w_idx_ref, row_ref  # consumed by the index_maps only
  k = pl.program_id(1)

  @pl.when(k == 0)
  def _():
    acc_ref[...] = jnp.zeros_like(acc_ref)

  acc_ref[...] += jnp.dot(x_ref[...], w_ref[0],
                          preferred_element_type=jnp.float32)

  @pl.when(k == pl.num_programs(1) - 1)
  def _():
    o_ref[...] = (acc_ref[...] + b_ref[0]).astype(o_ref.dtype)


def _patch_projection(w_idx, row_blk, xcat, w_stack, b_stack, *,
                      tm, tk, out_dtype, vmem_limit):
  """out[r0:r0+tm] = xcat[r0:r0+tm] @ w_stack[s] + b_stack[s] for every
  prefetched tile (s, r0), one Pallas call for all specs."""
  m_total, k_dim = xcat.shape
  s_dim, k2, n_out = w_stack.shape
  assert k_dim == k2 and m_total % tm == 0 and k_dim % tk == 0
  n_tiles = m_total // tm
  kb = k_dim // tk

  in_bytes = (xcat.size * xcat.dtype.itemsize
              + w_stack.size * w_stack.dtype.itemsize
              + b_stack.size * b_stack.dtype.itemsize)
  out_bytes = m_total * n_out * jnp.dtype(out_dtype).itemsize
  cost = pl.CostEstimate(flops=2 * m_total * k_dim * n_out,
                         transcendentals=0,
                         bytes_accessed=in_bytes + out_bytes)

  return pl.pallas_call(
      _patch_proj_kernel,
      out_shape=jax.ShapeDtypeStruct((m_total, n_out), out_dtype),
      grid_spec=pltpu.PrefetchScalarGridSpec(
          num_scalar_prefetch=2,
          grid=(n_tiles, kb),
          in_specs=[
              pl.BlockSpec((tm, tk), lambda t, k, wi, rb: (rb[t], k)),
              pl.BlockSpec((1, tk, n_out), lambda t, k, wi, rb: (wi[t], k, 0)),
              pl.BlockSpec((1, 1, n_out), lambda t, k, wi, rb: (wi[t], 0, 0)),
          ],
          out_specs=pl.BlockSpec((tm, n_out), lambda t, k, wi, rb: (rb[t], 0)),
          scratch_shapes=[pltpu.VMEM((tm, n_out), jnp.float32)],
      ),
      compiler_params=pltpu.CompilerParams(
          dimension_semantics=("parallel", "arbitrary"),
          vmem_limit_bytes=int(vmem_limit)),
      cost_estimate=cost,
  )(w_idx, row_blk, xcat, w_stack, b_stack)


# ---------------------------------------------------------------------------
# Patcher module.
# ---------------------------------------------------------------------------
class Patcher:

  def __init__(self, patch_specs, mode=CONV, in_channels=None, key=None,
               dtype=jnp.float32, compute_dtype=jnp.bfloat16):
    verify_patch_specs(patch_specs)
    assert mode in PATCH_MODES, f"Unknown patcher mode: {mode}"
    assert mode != CONV or in_channels is not None
    self.patch_specs = list(patch_specs)
    self.mode = mode
    self.in_channels = in_channels
    # Default bf16 compute (f32 accumulation + f32 bias stay inside the kernel).
    self.compute_dtype = compute_dtype
    self.convs = []
    if mode == CONV:
      # The original module's Conv2d uses stride == kernel size; guard the
      # patchify assumption explicitly (review correctness concern).
      for ps in self.patch_specs:
        assert ps.hstride == ps.hsize and ps.wstride == ps.wsize, (
            f"CONV mode requires stride == patch size, got {ps}")
      if key is None:
        key = jax.random.PRNGKey(0)
      keys = jax.random.split(key, 2 * len(self.patch_specs))
      w_mats, b_vecs = [], []
      for i, ps in enumerate(self.patch_specs):
        oc = ps.hsize * ps.wsize * in_channels
        fan_in = in_channels * ps.hsize * ps.wsize
        bound = 1.0 / (fan_in ** 0.5)
        # Deterministic synthetic init (Conv2d-shaped weight (OC, C, kh, kw)).
        w = jax.random.uniform(keys[2 * i],
                               (oc, in_channels, ps.hsize, ps.wsize),
                               dtype, -bound, bound)
        b = jax.random.uniform(keys[2 * i + 1], (oc,), dtype, -bound, bound)
        self.convs.append((w, b))
        w_mats.append(w.reshape(oc, -1).T)   # (K, N); same K, N for every spec
        b_vecs.append(b)
      self._proj_dim = w_mats[0].shape[1]    # N = hs*ws*C (no lane padding)
      wdt = compute_dtype or dtype
      self._w_stack = jnp.stack(w_mats).astype(wdt)        # (S, K, N)
      self._b_stack = jnp.stack(b_vecs)[:, None, :].astype(jnp.float32)
      self._vmem_budget, self._vmem_limit = _vmem_budget_and_limit()
      self._jit_conv = jax.jit(self._conv_pallas)

  # -- shared JAX glue: per-spec non-overlapping patch matrices ------------
  def _patchify(self, x):
    xps, geoms = [], []
    for ps in self.patch_specs:
      hpad = compute_pad(x.shape[-2], ps.hsize, ps.hstride, ps.hbase)
      wpad = compute_pad(x.shape[-1], ps.wsize, ps.wstride, ps.wbase)
      xpad = pad_hw(x, hpad, wpad)
      xp, nh, nw = extract_nonoverlap_patches(xpad, ps.hsize, ps.wsize)
      xps.append(xp)
      geoms.append((nh, nw))
    return xps, geoms

  # -- CONV mode: patchify + single flattened-grid Pallas projection -------
  def _conv_pallas(self, x):
    x = norm_shape(x)
    out_dtype = x.dtype
    B = x.shape[0]
    cdt = self.compute_dtype or out_dtype
    xps, geoms = self._patchify(x.astype(cdt))
    K = xps[0].shape[1]
    Np = self._proj_dim
    m_sizes = [int(p.shape[0]) for p in xps]

    tm, tk = _pick_tiles(max(m_sizes), K, Np,
                         jnp.dtype(cdt).itemsize,
                         jnp.dtype(self._w_stack.dtype).itemsize,
                         jnp.dtype(out_dtype).itemsize,
                         self._vmem_budget)

    # Per-spec row padding only to the spec's OWN multiple of tm; concatenate
    # along rows into a single (M_total, K) array (one fused HBM write under
    # jit).  Scalar-prefetched tables drive which weight / row block each grid
    # step uses, so no tile is wasted on another spec's max-M padding.
    pieces, w_idx, row_blk, offsets = [], [], [], []
    off = 0
    for s, (p, m_s) in enumerate(zip(xps, m_sizes)):
      n_tiles = -(-m_s // tm)
      m_pad = n_tiles * tm
      pieces.append(jnp.pad(p, ((0, m_pad - m_s), (0, 0))))
      w_idx.extend([s] * n_tiles)
      row_blk.extend(off // tm + j for j in range(n_tiles))
      offsets.append(off)
      off += m_pad
    xcat = jnp.concatenate(pieces, axis=0)
    w_idx = jnp.asarray(w_idx, jnp.int32)
    row_blk = jnp.asarray(row_blk, jnp.int32)

    out = _patch_projection(
        w_idx, row_blk, xcat, self._w_stack.astype(cdt), self._b_stack,
        tm=tm, tk=tk, out_dtype=out_dtype, vmem_limit=self._vmem_limit)

    # conv output rearranged as 'b c h w -> b (h w) c', per spec, then concat.
    pieces = []
    for (nh, nw), off_s, m_s in zip(geoms, offsets, m_sizes):
      pieces.append(out[off_s:off_s + m_s].reshape(B, nh * nw, Np))
    return jnp.concatenate(pieces, axis=1)

  def _conv_reference(self, x):
    x = norm_shape(x)
    B = x.shape[0]
    xps, geoms = self._patchify(x)
    patches = []
    for xp, (nh, nw), (w, b) in zip(xps, geoms, self.convs):
      oc = w.shape[0]
      y = jnp.dot(xp, w.reshape(oc, -1).T) + b[None, :]
      patches.append(y.reshape(B, nh * nw, oc))
    return jnp.concatenate(patches, axis=1)

  # -- UNFOLD mode: pure data movement (no matmul/reduction hot path) ------
  def _generate_unfold(self, x):
    # TODO(synk): unfold mode is pure gather/reshape (no FLOPs), kept in JAX.
    x = norm_shape(x)
    patches = []
    for ps in self.patch_specs:
      hpad = compute_pad(x.shape[-2], ps.hsize, ps.hstride, ps.hbase)
      wpad = compute_pad(x.shape[-1], ps.wsize, ps.wstride, ps.wbase)
      xpad = pad_hw(x, hpad, wpad)
      B, C, H, W = xpad.shape
      nh = (H - ps.hsize) // ps.hstride + 1
      nw = (W - ps.wsize) // ps.wstride + 1
      hi = jnp.arange(nh)[:, None] * ps.hstride + jnp.arange(ps.hsize)[None, :]
      wi = jnp.arange(nw)[:, None] * ps.wstride + jnp.arange(ps.wsize)[None, :]
      p = xpad[:, :, hi, :][:, :, :, :, wi]          # (B, C, nh, sh, nw, sw)
      p = jnp.transpose(p, (0, 2, 4, 1, 3, 5))       # b nh nw c sh sw
      patches.append(p.reshape(B, nh * nw, C * ps.hsize * ps.wsize))
    return jnp.concatenate(patches, axis=1)

  def __call__(self, x):
    if self.mode == UNFOLD:
      return self._generate_unfold(x)
    return self._jit_conv(x)

  def reference(self, x):
    if self.mode == UNFOLD:
      return self._generate_unfold(x)
    return self._conv_reference(x)


if __name__ == "__main__":
  key = jax.random.PRNGKey(0)
  kx, kp = jax.random.split(key)

  in_channels = 4
  specs = [
      PatchSpec(hsize=4, wsize=4, hstride=4, wstride=4, hbase=0, wbase=0),
      PatchSpec(hsize=2, wsize=8, hstride=2, wstride=8, hbase=0, wbase=0),
      PatchSpec(hsize=4, wsize=4, hstride=4, wstride=4, hbase=2, wbase=0),
  ]
  x = jax.random.normal(kx, (2, in_channels, 16, 16), dtype=jnp.float32)

  # Default path: bf16 compute with f32 accumulation -> loose tolerance vs the
  # f32 reference.
  patcher = Patcher(specs, mode=CONV, in_channels=in_channels, key=kp)
  y = patcher(x)
  jax.block_until_ready(y)
  y_ref = patcher.reference(x)
  assert y.shape == y_ref.shape, (y.shape, y_ref.shape)
  max_err = float(jnp.max(jnp.abs(y - y_ref)))
  assert max_err < 5e-2, f"bf16 path max abs error {max_err}"

  # Full f32 compute path: strict check.
  patcher32 = Patcher(specs, mode=CONV, in_channels=in_channels, key=kp,
                      compute_dtype=None)
  y32 = patcher32(x)
  jax.block_until_ready(y32)
  y32_ref = patcher32.reference(x)
  max_err32 = float(jnp.max(jnp.abs(y32 - y32_ref)))
  assert max_err32 < 1e-4, f"f32 path max abs error {max_err32}"

  # UNFOLD mode smoke test (pure data movement, plain JAX path).
  unfolder = Patcher(specs, mode=UNFOLD)
  yu = unfolder(x)
  jax.block_until_ready(yu)
  assert yu.shape == y.shape, (yu.shape, y.shape)

  print("KERNEL_OK")
</pallas_src>

<mosaic_0001>
module attributes {stable_mosaic.version = 11 : i64} {
  func.func @_patch_proj_kernel(%arg0: i32, %arg1: i32, %arg2: memref<3xi32, #tpu.memory_space<smem>>, %arg3: memref<3xi32, #tpu.memory_space<smem>>, %arg4: memref<40x64xbf16, #tpu.memory_space<vmem>>, %arg5: memref<1x64x64xbf16, #tpu.memory_space<vmem>>, %arg6: memref<1x1x64xf32, #tpu.memory_space<vmem>>, %arg7: memref<40x64xf32, #tpu.memory_space<vmem>>, %arg8: memref<40x64xf32, #tpu.memory_space<vmem>>) attributes {dimension_semantics = [#tpu.dimension_semantics<parallel>, #tpu.dimension_semantics<arbitrary>], iteration_bounds = array<i64: 3, 1>, scalar_prefetch = 2 : i64, scratch_operands = 1 : i64, tpu.core_type = #tpu.core_type<tc>, window_params = [{transform_indices = @transform_0, window_bounds = array<i64: 40, 64>}, {transform_indices = @transform_1, window_bounds = array<i64: 1, 64, 64>}, {transform_indices = @transform_2, window_bounds = array<i64: 1, 1, 64>}, {transform_indices = @transform_3, window_bounds = array<i64: 40, 64>}]} {
    %c0_i32 = arith.constant 0 : i32
    %0 = arith.cmpi eq, %arg1, %c0_i32 : i32
    %1 = arith.extui %0 : i1 to i32
    %c0_i32_0 = arith.constant 0 : i32
    %2 = arith.cmpi ne, %1, %c0_i32_0 : i32
    scf.if %2 {
      %cst_11 = arith.constant 0.000000e+00 : f32
      %13 = vector.broadcast %cst_11 : f32 to vector<40x64xf32>
      %c0_12 = arith.constant 0 : index
      %c0_13 = arith.constant 0 : index
      %14 = vector.load %arg8[%c0_12, %c0_13] : memref<40x64xf32, #tpu.memory_space<vmem>>, vector<40x64xf32>
      tpu.vector_store %arg8[%c0_12, %c0_13], %13 {strides = array<i32>} : memref<40x64xf32, #tpu.memory_space<vmem>>, vector<40x64xf32>,
    } else {
    }
    %c0 = arith.constant 0 : index
    %c0_1 = arith.constant 0 : index
    %3 = vector.load %arg8[%c0, %c0_1] : memref<40x64xf32, #tpu.memory_space<vmem>>, vector<40x64xf32>
    %c0_2 = arith.constant 0 : index
    %c0_3 = arith.constant 0 : index
    %4 = vector.load %arg4[%c0_2, %c0_3] : memref<40x64xbf16, #tpu.memory_space<vmem>>, vector<40x64xbf16>
    %c0_4 = arith.constant 0 : index
    %c0_5 = arith.constant 0 : index
    %c0_6 = arith.constant 0 : index
    %5 = vector.load %arg5[%c0_4, %c0_5, %c0_6] : memref<1x64x64xbf16, #tpu.memory_space<vmem>>, vector<1x64x64xbf16>
    %6 = vector.shape_cast %5 : vector<1x64x64xbf16> to vector<64x64xbf16>
    %cst = arith.constant dense<0.000000e+00> : vector<40x64xf32>
    %7 = tpu.matmul %4, %6, %cst {dimension_numbers = #tpu.dot_dimension_numbers<[1], [0], [0], [1], [0, 0, 1, 1], [], []>} : vector<40x64xbf16>, vector<64x64xbf16>, vector<40x64xf32> -> vector<40x64xf32>
    %8 = arith.addf %3, %7 : vector<40x64xf32>
    %c0_7 = arith.constant 0 : index
    %c0_8 = arith.constant 0 : index
    %9 = vector.load %arg8[%c0_7, %c0_8] : memref<40x64xf32, #tpu.memory_space<vmem>>, vector<40x64xf32>
    tpu.vector_store %arg8[%c0_7, %c0_8], %8 {strides = array<i32>} : memref<40x64xf32, #tpu.memory_space<vmem>>, vector<40x64xf32>,
    %c0_i32_9 = arith.constant 0 : i32
    %10 = arith.cmpi eq, %arg1, %c0_i32_9 : i32
    %11 = arith.extui %10 : i1 to i32
    %c0_i32_10 = arith.constant 0 : i32
    %12 = arith.cmpi ne, %11, %c0_i32_10 : i32
    scf.if %12 {
      %c0_11 = arith.constant 0 : index
      %c0_12 = arith.constant 0 : index
      %13 = vector.load %arg8[%c0_11, %c0_12] : memref<40x64xf32, #tpu.memory_space<vmem>>, vector<40x64xf32>
      %c0_13 = arith.constant 0 : index
      %c0_14 = arith.constant 0 : index
      %c0_15 = arith.constant 0 : index
      %14 = vector.load %arg6[%c0_13, %c0_14, %c0_15] : memref<1x1x64xf32, #tpu.memory_space<vmem>>, vector<1x1x64xf32>
      %15 = vector.shape_cast %14 : vector<1x1x64xf32> to vector<1x64xf32>
      %16 = vector.broadcast %15 : vector<1x64xf32> to vector<40x64xf32>
      %17 = arith.addf %13, %16 : vector<40x64xf32>
      %c0_16 = arith.constant 0 : index
      %c0_17 = arith.constant 0 : index
      %18 = vector.load %arg7[%c0_16, %c0_17] : memref<40x64xf32, #tpu.memory_space<vmem>>, vector<40x64xf32>
      tpu.vector_store %arg7[%c0_16, %c0_17], %17 {strides = array<i32>} : memref<40x64xf32, #tpu.memory_space<vmem>>, vector<40x64xf32>,
    } else {
    }
    return
  }
  func.func @transform_0(%arg0: i32, %arg1: i32, %arg2: memref<3xi32, #tpu.memory_space<smem>>, %arg3: memref<3xi32, #tpu.memory_space<smem>>) -> (i32, i32) {
    %0 = arith.index_cast %arg0 : i32 to index
    %1 = memref.load %arg3[%0] : memref<3xi32, #tpu.memory_space<smem>>
    %c0_i32 = arith.constant 0 : i32
    return %1, %arg1 : i32, i32
  }
  func.func @transform_1(%arg0: i32, %arg1: i32, %arg2: memref<3xi32, #tpu.memory_space<smem>>, %arg3: memref<3xi32, #tpu.memory_space<smem>>) -> (i32, i32, i32) {
    %0 = arith.index_cast %arg0 : i32 to index
    %1 = memref.load %arg2[%0] : memref<3xi32, #tpu.memory_space<smem>>
    %c0_i32 = arith.constant 0 : i32
    %c0_i32_0 = arith.constant 0 : i32
    return %1, %arg1, %c0_i32 : i32, i32, i32
  }
  func.func @transform_2(%arg0: i32, %arg1: i32, %arg2: memref<3xi32, #tpu.memory_space<smem>>, %arg3: memref<3xi32, #tpu.memory_space<smem>>) -> (i32, i32, i32) {
    %0 = arith.index_cast %arg0 : i32 to index
    %1 = memref.load %arg2[%0] : memref<3xi32, #tpu.memory_space<smem>>
    %c0_i32 = arith.constant 0 : i32
    %c0_i32_0 = arith.constant 0 : i32
    %c0_i32_1 = arith.constant 0 : i32
    return %1, %c0_i32, %c0_i32_0 : i32, i32, i32
  }
  func.func @transform_3(%arg0: i32, %arg1: i32, %arg2: memref<3xi32, #tpu.memory_space<smem>>, %arg3: memref<3xi32, #tpu.memory_space<smem>>) -> (i32, i32) {
    %0 = arith.index_cast %arg0 : i32 to index
    %1 = memref.load %arg3[%0] : memref<3xi32, #tpu.memory_space<smem>>
    %c0_i32 = arith.constant 0 : i32
    %c0_i32_0 = arith.constant 0 : i32
    return %1, %c0_i32 : i32, i32
  }
}

</mosaic_0001>

<llo_original>
// kernel: _conv_pallas.1
$region0: #{_conv_pallas.1}
  #allocation0 [shape = 'u32[]', space=smem, size = 0x4, offset = 0x4, fixed_abs, tag = 'smem constant byte address 0x4 - core index']
  #allocation1 [shape = 'u32[72,128]{1,0:T(1,128)}', space=vmem, size = 0x9000, scoped, tag = 'internal scratch']
  #allocation2 [shape = 'f32[40,64]{1,0:T(8,128)}', space=vmem, size = 0x5000, scoped, tag = 'scratch operand']
  #allocation3 [shape = 's32[1]{0}', space=sflag, size = 0x4, scoped, tag = 'scoped memory for _conv_pallas.1']
  #allocation4 [shape = 'u8[512]{0}', space=smem, size = 0x200, scoped, tag = 'prefetched SMEM operand 0']
  #allocation5 [shape = 'u8[512]{0}', space=smem, size = 0x200, scoped, tag = 'prefetched SMEM operand 1']
  %s0 = inlined_call_operand.vmem [shape: s32[3], index: 0, kind: input, shape index: {}, may-alias: {0,1}]
  %s1 = inlined_call_operand.vmem [shape: s32[3], index: 1, kind: input, shape index: {}, may-alias: {0,1}]
  %s2 = inlined_call_operand.vmem [shape: bf16[120,64], index: 2, kind: input, shape index: {}]
  %s3 = inlined_call_operand.vmem [shape: bf16[3,64,64], index: 3, kind: input, shape index: {}]
  %s4 = inlined_call_operand.vmem [shape: f32[3,1,64], index: 4, kind: input, shape index: {}]
  %s5 = inlined_call_operand.vmem [shape: f32[120,64], index: 5, kind: output, shape index: {}]
  %s6 = sld [smem:[#allocation0]]
  $region53: #{_conv_pallas.1} parent=0
    _
  %s8 = ssub.s32 1, %s6
  %s9 = scalar_select 0, %s8, %s6
  %s11 = sshll.u32 %s0, 4
  %s12 = int_to_ptr.vmem [resolvable:$true] %s11
  %14 = dma.vmem_to_smem %s12, 16, [#allocation4], [#allocation3]
  %s16 = sshll.u32 %s1, 4
  %s17 = int_to_ptr.vmem [resolvable:$true] %s16
  %19 = dma.vmem_to_smem %s17, 16, [#allocation5], [#allocation3]
  %21 = dma.done [#allocation3], 32
  %22 = sfence
  loop: start=0, step=1, limit=5
  $region2: #{_conv_pallas.1} parent=0 // loop_pre_header
    _
  $region3: #{_conv_pallas.1} parent=0 // loop_header
    %s24 = sphi 0, %s28
    %p25 = scmp.ge.s32.totalorder %s24, 5
    %s31 = sphi 0, %s43
    %s32 = sphi 0, %s39
    %s33 = sphi 0, %s31
    %s34 = sphi 0, %s32
    %s35 = sphi 0, %s33
    %s36 = sphi 0, %s34
    %s50 = sphi 0, %s52
    %s53 = sphi 0, %s50
    %s54 = sphi 0, %s53
    %s70 = sphi 0, %s54
    %s80 = sphi 0, %s82
    %s83 = sphi 0, %s80
    %s84 = sphi 0, %s83
    %s100 = sphi 0, %s84
    %s108 = sphi 0, %s110
    %s111 = sphi 0, %s108
    %s112 = sphi 0, %s111
    %s128 = sphi 0, %s112
    %s136 = sphi 0, %s138
    %s139 = sphi 0, %s136
    %s140 = sphi 0, %s139
    %s156 = sphi 0, %s140
  $region4: #{_conv_pallas.1} parent=0 // loop_header_branch
    %27 = sbr.rel (%p25) target = $region8
  $region5: #{_conv_pallas.1} parent=0 // loop_body
    %s29 = ssub.s32 %s24, 1
    %s30 = ssub.s32 %s24, 2
    %s37 = sadd.s32 1, %s32
    %p38 = scmp.ge.s32.totalorder %s37, 1
    %s39 = scalar_select %p38, 0, %s37
    %s40 = sadd.s32 1, %s31
    %s41 = scalar_select %p38, %s40, %s31
    %p42 = scmp.ge.s32.totalorder %s41, 3
    %s43 = scalar_select %p42, 0, %s41
    %s44 = sld [smem:[#allocation5 + %s31]]
    %s45 = sld [smem:[#allocation5 + %s43]]
    %s46 = ssub.s32 %s44, %s45
    %s47 = ssub.s32 %s32, %s39
    %s48 = sor.u32 %s46, %s47
    %p49 = scmp.eq.s32.totalorder %s48, 0
    %s51 = sadd.s32 %s50, 1
    %s52 = scalar_select %p49, %s50, %s51
    %p55 = pneg %p49
    %p56 = scmp.eq.s32.totalorder %s24, 2
    %p57 = por %p55, %p56
    %p58 = scmp.ne.s32.totalorder %s50, %s53
    %p59 = scmp.eq.s32.totalorder %s24, 0
    %p60 = por %p58, %p59
    %p61 = scmp.ne.s32.totalorder %s50, %s53
    %p62 = scmp.eq.s32.totalorder %s29, 2
    %p63 = por %p61, %p62
    %p64 = scmp.ne.s32.totalorder %s53, %s54
    %p65 = scmp.eq.s32.totalorder %s29, 0
    %p66 = por %p64, %p65
    %p67 = scmp.ne.s32.totalorder %s53, %s54
    %p68 = scmp.eq.s32.totalorder %s30, 2
    %p69 = por %p67, %p68
    %p71 = scmp.ne.s32.totalorder %s54, %s70
    %p72 = scmp.eq.s32.totalorder %s30, 0
    %p73 = por %p71, %p72
    %s74 = sld [smem:[#allocation4 + %s31]]
    %s75 = sld [smem:[#allocation4 + %s43]]
    %s76 = ssub.s32 %s74, %s75
    %s77 = ssub.s32 %s32, %s39
    %s78 = sor.u32 %s76, %s77
    %p79 = scmp.eq.s32.totalorder %s78, 0
    %s81 = sadd.s32 %s80, 1
    %s82 = scalar_select %p79, %s80, %s81
    %p85 = pneg %p79
    %p86 = scmp.eq.s32.totalorder %s24, 2
    %p87 = por %p85, %p86
    %p88 = scmp.ne.s32.totalorder %s80, %s83
    %p89 = scmp.eq.s32.totalorder %s24, 0
    %p90 = por %p88, %p89
    %p91 = scmp.ne.s32.totalorder %s80, %s83
    %p92 = scmp.eq.s32.totalorder %s29, 2
    %p93 = por %p91, %p92
    %p94 = scmp.ne.s32.totalorder %s83, %s84
    %p95 = scmp.eq.s32.totalorder %s29, 0
    %p96 = por %p94, %p95
    %p97 = scmp.ne.s32.totalorder %s83, %s84
    %p98 = scmp.eq.s32.totalorder %s30, 2
    %p99 = por %p97, %p98
    %p101 = scmp.ne.s32.totalorder %s84, %s100
    %p102 = scmp.eq.s32.totalorder %s30, 0
    %p103 = por %p101, %p102
    %s104 = sld [smem:[#allocation4 + %s31]]
    %s105 = sld [smem:[#allocation4 + %s43]]
    %s106 = ssub.s32 %s104, %s105
    %p107 = scmp.eq.s32.totalorder %s106, 0
    %s109 = sadd.s32 %s108, 1
    %s110 = scalar_select %p107, %s108, %s109
    %p113 = pneg %p107
    %p114 = scmp.eq.s32.totalorder %s24, 2
    %p115 = por %p113, %p114
    %p116 = scmp.ne.s32.totalorder %s108, %s111
    %p117 = scmp.eq.s32.totalorder %s24, 0
    %p118 = por %p116, %p117
    %p119 = scmp.ne.s32.totalorder %s108, %s111
    %p120 = scmp.eq.s32.totalorder %s29, 2
    %p121 = por %p119, %p120
    %p122 = scmp.ne.s32.totalorder %s111, %s112
    %p123 = scmp.eq.s32.totalorder %s29, 0
    %p124 = por %p122, %p123
    %p125 = scmp.ne.s32.totalorder %s111, %s112
    %p126 = scmp.eq.s32.totalorder %s30, 2
    %p127 = por %p125, %p126
    %p129 = scmp.ne.s32.totalorder %s112, %s128
    %p130 = scmp.eq.s32.totalorder %s30, 0
    %p131 = por %p129, %p130
    %s132 = sld [smem:[#allocation5 + %s31]]
    %s133 = sld [smem:[#allocation5 + %s43]]
    %s134 = ssub.s32 %s132, %s133
    %p135 = scmp.eq.s32.totalorder %s134, 0
    %s137 = sadd.s32 %s136, 1
    %s138 = scalar_select %p135, %s136, %s137
    %p141 = pneg %p135
    %p142 = scmp.eq.s32.totalorder %s24, 2
    %p143 = por %p141, %p142
    %p144 = scmp.ne.s32.totalorder %s136, %s139
    %p145 = scmp.eq.s32.totalorder %s24, 0
    %p146 = por %p144, %p145
    %p147 = scmp.ne.s32.totalorder %s136, %s139
    %p148 = scmp.eq.s32.totalorder %s29, 2
    %p149 = por %p147, %p148
    %p150 = scmp.ne.s32.totalorder %s139, %s140
    %p151 = scmp.eq.s32.totalorder %s29, 0
    %p152 = por %p150, %p151
    %p153 = scmp.ne.s32.totalorder %s139, %s140
    %p154 = scmp.eq.s32.totalorder %s30, 2
    %p155 = por %p153, %p154
    %p157 = scmp.ne.s32.totalorder %s140, %s156
    %p158 = scmp.eq.s32.totalorder %s30, 0
    %p159 = por %p157, %p158
    %p160 = scmp.le.s32.totalorder 1, %s24
    %p161 = scmp.lt.s32.totalorder %s24, 4
    %p162 = pnand %p160, %p161
    %p163 = pneg %p162
    // Predicated region
    $region9: #{_conv_pallas.1} parent=5 // pred_check
      _
    $region10: #{_conv_pallas.1} parent=5 // pred_check_branch
      %165 = sbr.rel (%p162) target = $region12
    $region11: #{_conv_pallas.1} parent=5 // pred_region
      %s166 = ssub.s32 %s24, 1
    $region12: #{_conv_pallas.1} parent=5 // pred_fallthru
      _
    %p167 = scmp.lt.s32.totalorder %s24, 3
    // Predicated region
    $region13: #{_conv_pallas.1} parent=5 // pred_check
      %p168 = pneg %p167
    $region14: #{_conv_pallas.1} parent=5 // pred_check_branch
      %170 = sbr.rel (%p168) target = $region16
    $region15: #{_conv_pallas.1} parent=5 // pred_region
      // Predicated region
      $region17: #{_conv_pallas.1} parent=15 // pred_check
        %p171 = pneg %p60
      $region18: #{_conv_pallas.1} parent=15 // pred_check_branch
        %173 = sbr.rel (%p171) target = $region20
      $region19: #{_conv_pallas.1} parent=15 // pred_region
        %s174 = sld [smem:[#allocation5 + %s31]]
        %s175 = smul.u32 5, %s174
        %p176 = scmp.lt.s32.totalorder %s175, 14
        %s177 = scalar_select %p176, %s175, 14
        %p178 = scmp.lt.s32.totalorder %s32, 0
        %s179 = scalar_select %p178, %s32, 0
        %s180 = sadd.s32 %s179, %s177
        %s181 = smul.addr %s180, 4
        %s182 = scalar_lea.vmem %s2, %s181
        %s183 = sld [smem:[#allocation5 + %s31]]
        %s184 = smul.u32 5, %s183
      $region20: #{_conv_pallas.1} parent=15 // pred_fallthru
        _
      // Predicated region
      $region21: #{_conv_pallas.1} parent=15 // pred_check
        %p185 = pneg %p90
      $region22: #{_conv_pallas.1} parent=15 // pred_check_branch
        %187 = sbr.rel (%p185) target = $region24
      $region23: #{_conv_pallas.1} parent=15 // pred_region
        %s188 = sld [smem:[#allocation4 + %s31]]
        %s189 = smul.u32 8, %s32
        %p190 = scmp.lt.s32.totalorder %s188, 2
        %s191 = scalar_select %p190, %s188, 2
        %p192 = scmp.lt.s32.totalorder %s189, 7
        %s193 = scalar_select %p192, %s189, 7
        %s194 = smul.addr %s191, 8
        %s195 = sadd.s32 %s193, %s194
        %s196 = smul.addr %s195, 4
        %s197 = scalar_lea.vmem %s3, %s196
        %s198 = sld [smem:[#allocation4 + %s31]]
        %s199 = smul.u32 8, %s32
      $region24: #{_conv_pallas.1} parent=15 // pred_fallthru
        _
      // Predicated region
      $region25: #{_conv_pallas.1} parent=15 // pred_check
        %p200 = pneg %p118
      $region26: #{_conv_pallas.1} parent=15 // pred_check_branch
        %202 = sbr.rel (%p200) target = $region28
      $region27: #{_conv_pallas.1} parent=15 // pred_region
        %s203 = sld [smem:[#allocation4 + %s31]]
        %p204 = scmp.lt.s32.totalorder %s203, 2
        %s205 = scalar_select %p204, %s203, 2
        %s206 = scalar_lea.vmem %s4, %s205
        %s207 = sld [smem:[#allocation4 + %s31]]
      $region28: #{_conv_pallas.1} parent=15 // pred_fallthru
        _
    $region16: #{_conv_pallas.1} parent=5 // pred_fallthru
      _
    %p208 = scmp.le.s32.totalorder 1, %s24
    %p209 = scmp.lt.s32.totalorder %s24, 4
    %p210 = pnand %p208, %p209
    %p211 = pneg %p210
    // Predicated region
    $region29: #{_conv_pallas.1} parent=5 // pred_check
      _
    $region30: #{_conv_pallas.1} parent=5 // pred_check_branch
      %213 = sbr.rel (%p210) target = $region32
    $region31: #{_conv_pallas.1} parent=5 // pred_region
      %s214 = ssub.s32 %s24, 1
      %s215 = sld [smem:[#allocation5 + %s33]]
      %s216 = smul.u32 5, %s215
      %p217 = scmp.lt.s32.totalorder %s216, 14
      %s218 = scalar_select %p217, %s216, 14
      %p219 = scmp.lt.s32.totalorder %s34, 0
      %s220 = scalar_select %p219, %s34, 0
      %s221 = sadd.s32 %s220, %s218
      %s222 = smul.addr %s221, 4
      %s223 = scalar_lea.vmem %s2, %s222
      %p224 = pneg %p66
      %p225 = pneg %p63
      %s226 = sld [smem:[#allocation4 + %s33]]
      %s227 = smul.u32 8, %s34
      %p228 = scmp.lt.s32.totalorder %s226, 2
      %s229 = scalar_select %p228, %s226, 2
      %p230 = scmp.lt.s32.totalorder %s227, 7
      %s231 = scalar_select %p230, %s227, 7
      %s232 = smul.addr %s229, 8
      %s233 = sadd.s32 %s231, %s232
      %s234 = smul.addr %s233, 4
      %s235 = scalar_lea.vmem %s3, %s234
      %p236 = pneg %p96
      %p237 = pneg %p93
      %s238 = sld [smem:[#allocation4 + %s33]]
      %p239 = scmp.lt.s32.totalorder %s238, 2
      %s240 = scalar_select %p239, %s238, 2
      %s241 = scalar_lea.vmem %s4, %s240
      %p242 = pneg %p124
      %p243 = pneg %p121
      %p244 = pneg %p152
      %p245 = pneg %p149
      %s246 = sld [smem:[#allocation5 + %s33]]
      %s247 = smul.u32 5, %s246
      %p248 = scmp.lt.s32.totalorder %s247, 14
      %s249 = scalar_select %p248, %s247, 14
      %s250 = smul.addr %s249, 8
      %s251 = scalar_lea.vmem %s5, %s250
      %s252 = sld [smem:[#allocation5 + %s33]]
      %s253 = smul.u32 5, %s252
      %p254 = scmp.lt.s32.totalorder %s253, 14
      %s255 = scalar_select %p254, %s253, 14
      %p256 = scmp.lt.s32.totalorder %s34, 0
      %s257 = scalar_select %p256, %s34, 0
      %s258 = sadd.s32 %s257, %s255
      %s259 = smul.addr %s258, 4
      %s260 = scalar_lea.vmem %s2, %s259
      %s261 = sld [smem:[#allocation5 + %s33]]
      %s262 = smul.u32 5, %s261
      %s263 = sld [smem:[#allocation4 + %s33]]
      %s264 = smul.u32 8, %s34
      %p265 = scmp.lt.s32.totalorder %s263, 2
      %s266 = scalar_select %p265, %s263, 2
      %p267 = scmp.lt.s32.totalorder %s264, 7
      %s268 = scalar_select %p267, %s264, 7
      %s269 = smul.addr %s266, 8
      %s270 = sadd.s32 %s268, %s269
      %s271 = smul.addr %s270, 4
      %s272 = scalar_lea.vmem %s3, %s271
      %s273 = sld [smem:[#allocation4 + %s33]]
      %s274 = smul.u32 8, %s34
      %s275 = sld [smem:[#allocation4 + %s33]]
      %p276 = scmp.lt.s32.totalorder %s275, 2
      %s277 = scalar_select %p276, %s275, 2
      %s278 = scalar_lea.vmem %s4, %s277
      %s279 = sld [smem:[#allocation4 + %s33]]
      %s280 = sld [smem:[#allocation5 + %s33]]
      %s281 = smul.u32 5, %s280
      %p282 = scmp.lt.s32.totalorder %s281, 14
      %s283 = scalar_select %p282, %s281, 14
      %s284 = smul.addr %s283, 8
      %s285 = scalar_lea.vmem %s5, %s284
      %s286 = sld [smem:[#allocation5 + %s33]]
      %s287 = smul.u32 5, %s286
      %p289 = scmp.eq.s32.totalorder %s34, 0
      // Predicated region
      $region33: #{_conv_pallas.1} parent=31 // pred_check
        %p290 = pneg %p289
      $region34: #{_conv_pallas.1} parent=31 // pred_check_branch
        %292 = sbr.rel (%p290) target = $region36
      $region35: #{_conv_pallas.1} parent=31 // pred_region
        %vm293 = vcmask 523264
        %294 = vst.msk [vmem:[#allocation2] sm:$0xff] %vm293, 0.0
        %295 = vst.msk [vmem:[#allocation2 + $0x8] sm:$0xff] %vm293, 0.0
        %296 = vst.msk [vmem:[#allocation2 + $0x10] sm:$0xff] %vm293, 0.0
        %297 = vst.msk [vmem:[#allocation2 + $0x18] sm:$0xff] %vm293, 0.0
        %298 = vst.msk [vmem:[#allocation2 + $0x20] sm:$0xff] %vm293, 0.0
      $region36: #{_conv_pallas.1} parent=31 // pred_fallthru
        _
      %v299 = vld [vmem:[#allocation2] sm:$0xff]
      %v300 = vld [vmem:[#allocation2 + $0x8] sm:$0xff]
      %v301 = vld [vmem:[#allocation2 + $0x10] sm:$0xff]
      %v302 = vld [vmem:[#allocation2 + $0x18] sm:$0xff]
      %v303 = vld [vmem:[#allocation2 + $0x20] sm:$0xff]
      %v304 = vld [vmem:[%s260] sm:$0xf]
      %v305 = vld [vmem:[%s260 + $0x4] sm:$0xf]
      %v306 = vld [vmem:[%s260 + $0x8] sm:$0xf]
      %v307 = vld [vmem:[%s260 + $0xc] sm:$0xf]
      %v308 = vld [vmem:[%s260 + $0x10] sm:$0xf]
      %v309 = vld [vmem:[%s272] sm:$0xf]
      %v310 = vld [vmem:[%s272 + $0x4] sm:$0xf]
      %v311 = vld [vmem:[%s272 + $0x8] sm:$0xf]
      %v312 = vld [vmem:[%s272 + $0xc] sm:$0xf]
      %v313 = vld [vmem:[%s272 + $0x10] sm:$0xf]
      %v314 = vld [vmem:[%s272 + $0x14] sm:$0xf]
      %v315 = vld [vmem:[%s272 + $0x18] sm:$0xf]
      %v316 = vld [vmem:[%s272 + $0x1c] sm:$0xf]
      %v322 = vunpack.c.l.b16 %v304
      %v323 = vunpack.c.l.b16 %v305
      %v324 = vunpack.c.l.b16 %v306
      %v325 = vunpack.c.l.b16 %v307
      %v326 = vunpack.c.l.b16 %v308
      %v327 = vpack.c.b16 %v323, %v322
      %v328 = vpack.c.b16 %v325, %v324
      %v329 = vpack.c.b16 %v326, %v326
      %v338 = vunpack.c.l.b16 %v309
      %v339 = vunpack.c.l.b16 %v310
      %v340 = vunpack.c.l.b16 %v311
      %v341 = vunpack.c.l.b16 %v312
      %v342 = vunpack.c.l.b16 %v313
      %v343 = vunpack.c.l.b16 %v314
      %v344 = vunpack.c.l.b16 %v315
      %v345 = vunpack.c.l.b16 %v316
      %v346 = vpack.c.b16 %v339, %v338
      %v347 = vpack.c.b16 %v341, %v340
      %v348 = vpack.c.b16 %v343, %v342
      %v349 = vpack.c.b16 %v345, %v344
      %vm354 = vcmask 523264
      %v356 = vsel %vm354, %v327, 0
      %v359 = vsel %vm354, %v328, 0
      %v362 = vsel %vm354, %v329, 0
      %364 = vmatpush.bf16.msra.mxu0 0
      %365 = vmatpush.bf16.msra.mxu0 0
      %366 = vmatpush.bf16.msra.mxu0 0
      %367 = vmatpush.bf16.msra.mxu0 0
      %368 = vmatpush.bf16.msra.mxu0 %v349
      %369 = vmatpush.bf16.msra.mxu0 %v348
      %370 = vmatpush.bf16.msra.mxu0 %v347
      %371 = vmatpush.bf16.msra.mxu0 %v346
      %372 = vmatmul.bf16.gmra.mxu0 %v356
      %v373 = vpop.f32.mrf.mxu0
      %v374 = vadd.f32 0.0, %v373
      %v375 = vpop.f32.mrf.mxu0
      %v376 = vadd.f32 0.0, %v375
      %377 = vmatmul.bf16.gmra.mxu0 %v359
      %v378 = vpop.f32.mrf.mxu0
      %v379 = vadd.f32 0.0, %v378
      %v380 = vpop.f32.mrf.mxu0
      %v381 = vadd.f32 0.0, %v380
      %382 = vmatmul.bf16.gmra.mxu0 %v362
      %v383 = vpop.f32.mrf.mxu0
      %v384 = vadd.f32 0.0, %v383
      %v385 = vpop.f32.mrf.mxu0
      %386 = vdwg.mxu0
      %v387 = vadd.f32 %v299, %v374
      %v388 = vadd.f32 %v300, %v376
      %v389 = vadd.f32 %v301, %v379
      %v390 = vadd.f32 %v302, %v381
      %v391 = vadd.f32 %v303, %v384
      %392 = vst.msk [vmem:[#allocation2] sm:$0xff] %vm354, %v387
      %393 = vst.msk [vmem:[#allocation2 + $0x8] sm:$0xff] %vm354, %v388
      %394 = vst.msk [vmem:[#allocation2 + $0x10] sm:$0xff] %vm354, %v389
      %395 = vst.msk [vmem:[#allocation2 + $0x18] sm:$0xff] %vm354, %v390
      %396 = vst.msk [vmem:[#allocation2 + $0x20] sm:$0xff] %vm354, %v391
      // Predicated region
      $region37: #{_conv_pallas.1} parent=31 // pred_check
        %p397 = pneg %p289
      $region38: #{_conv_pallas.1} parent=31 // pred_check_branch
        %399 = sbr.rel (%p397) target = $region40
      $region39: #{_conv_pallas.1} parent=31 // pred_region
        %v400 = vld [vmem:[#allocation2] sm:$0xff]
        %v401 = vld [vmem:[#allocation2 + $0x8] sm:$0xff]
        %v402 = vld [vmem:[#allocation2 + $0x10] sm:$0xff]
        %v403 = vld [vmem:[#allocation2 + $0x18] sm:$0xff]
        %v404 = vld [vmem:[#allocation2 + $0x20] sm:$0xff]
        %v405 = vld [vmem:[%s278] sm:$0x1]
        %v407 = vperm.slane %v405, 0
        %v409 = vadd.f32 %v400, %v407
        %v410 = vadd.f32 %v401, %v407
        %v411 = vadd.f32 %v402, %v407
        %v412 = vadd.f32 %v403, %v407
        %v413 = vadd.f32 %v404, %v407
        %414 = vst.msk [vmem:[%s285] sm:$0xff] %vm354, %v409
        %415 = vst.msk [vmem:[%s285 + $0x8] sm:$0xff] %vm354, %v410
        %416 = vst.msk [vmem:[%s285 + $0x10] sm:$0xff] %vm354, %v411
        %417 = vst.msk [vmem:[%s285 + $0x18] sm:$0xff] %vm354, %v412
        %418 = vst.msk [vmem:[%s285 + $0x20] sm:$0xff] %vm354, %v413
      $region40: #{_conv_pallas.1} parent=31 // pred_fallthru
        _
      %s419 = sld [smem:[#allocation5 + %s33]]
      %s420 = smul.u32 5, %s419
      %p421 = scmp.lt.s32.totalorder %s420, 14
      %s422 = scalar_select %p421, %s420, 14
      %s423 = smul.addr %s422, 8
      %s424 = scalar_lea.vmem %s5, %s423
      // Predicated region
      $region41: #{_conv_pallas.1} parent=31 // pred_check
        %p425 = pneg %p149
      $region42: #{_conv_pallas.1} parent=31 // pred_check_branch
        %427 = sbr.rel (%p425) target = $region44
      $region43: #{_conv_pallas.1} parent=31 // pred_region
        %s428 = sld [smem:[#allocation5 + %s33]]
        %s429 = smul.u32 5, %s428
      $region44: #{_conv_pallas.1} parent=31 // pred_fallthru
        _
    $region32: #{_conv_pallas.1} parent=5 // pred_fallthru
      _
    %p430 = scmp.le.s32.totalorder 2, %s24
    // Predicated region
    $region45: #{_conv_pallas.1} parent=5 // pred_check
      %p431 = pneg %p430
    $region46: #{_conv_pallas.1} parent=5 // pred_check_branch
      %433 = sbr.rel (%p431) target = $region48
    $region47: #{_conv_pallas.1} parent=5 // pred_region
      %s434 = ssub.s32 %s24, 2
      // Predicated region
      $region49: #{_conv_pallas.1} parent=47 // pred_check
        %p435 = pneg %p155
      $region50: #{_conv_pallas.1} parent=47 // pred_check_branch
        %437 = sbr.rel (%p435) target = $region52
      $region51: #{_conv_pallas.1} parent=47 // pred_region
        %s438 = sld [smem:[#allocation5 + %s35]]
        %s439 = smul.u32 5, %s438
        %p440 = scmp.lt.s32.totalorder %s439, 14
        %s441 = scalar_select %p440, %s439, 14
        %s442 = smul.addr %s441, 8
        %s443 = scalar_lea.vmem %s5, %s442
      $region52: #{_conv_pallas.1} parent=47 // pred_fallthru
        _
    $region48: #{_conv_pallas.1} parent=5 // pred_fallthru
      _
  $region6: #{_conv_pallas.1} parent=0 // loop_footer
    %s28 = sadd.s32 1, %s24
  $region7: #{_conv_pallas.1} parent=0 // loop_footer_branch
    %23 = sbr.rel target = $region3
  $region8: #{_conv_pallas.1} parent=0 // loop_exit
    _

</llo_original>
